<compile_context>
chip_gen: v5e
topology: v5e:2x2
jax: 0.10.0
libtpu: 0.0.40
codegen_flags: <defaults>
</compile_context>

<pallas_src>
import functools

import jax
import jax.numpy as jnp
from jax.experimental import pallas as pl
from jax.experimental.pallas import tpu as pltpu


def _vq_kernel(z_ref, ne2e_ref, et_ref, e2_ref, zq_ref, idx_ref, msd_ref):
    z_t = z_ref[...]                                 # (e_dim, TM) f32
    neg2e = ne2e_ref[...]                            # (n_e, e_dim) f32, == -2*E
    e_t = et_ref[...]                                # (e_dim, n_e) f32
    e2 = e2_ref[...]                                 # (n_e, 1) f32, == ||E||^2
    n_e = neg2e.shape[0]

    # d[k, m] = ||E_k||^2 - 2*<E_k, z_m>   (||z_m||^2 dropped: argmin-invariant)
    d = jax.lax.dot_general(
        neg2e, z_t, (((1,), (0,)), ((), ())),
        preferred_element_type=jnp.float32) + e2     # (n_e, TM)

    # First-argmin over the codebook axis (matches torch.argmin tie-break).
    min_d = jnp.min(d, axis=0, keepdims=True)        # (1, TM)
    row = jax.lax.broadcasted_iota(jnp.int32, d.shape, 0)
    idx = jnp.min(jnp.where(d == min_d, row, jnp.int32(n_e)),
                  axis=0, keepdims=True)             # (1, TM) int32

    # Embedding gather as a one-hot matmul (MXU friendly), transposed output.
    one_hot = (row == idx).astype(jnp.float32)       # (n_e, TM), one 1 per col
    zq_t = jax.lax.dot_general(
        e_t, one_hot, (((1,), (0,)), ((), ())),
        preferred_element_type=jnp.float32)          # (e_dim, TM)

    zq_ref[...] = zq_t
    idx_ref[...] = idx

    # per-pixel ||z_q - z||^2 == min_k ||z - E_k||^2 == min_d + ||z||^2
    z2 = jnp.sum(z_t * z_t, axis=0, keepdims=True)   # (1, TM)
    msd_ref[...] = jnp.maximum(min_d + z2, 0.0)      # clamp FP cancellation


def _vmem_bytes_estimate(tm, n_e, e_dim):
    """Rough VMEM footprint for one grid step (f32), double-buffered blocks."""
    blocks = 2 * (e_dim * tm      # z tile (in)
                  + e_dim * tm    # z_q tile (out)
                  + tm            # idx row (out)
                  + tm) * 4       # msd row (out)
    codebook = 2 * (2 * n_e * e_dim + n_e * 128) * 4   # -2E, E^T, ||E||^2 (padded)
    intermediates = 5 * n_e * tm * 4                   # d, iota, mask, one_hot, ...
    return blocks + codebook + intermediates


def _choose_tile(hw, n_e, e_dim, tm_target, vmem_budget):
    """Largest column tile (multiple of 128, or full hw) under the VMEM budget."""
    if hw <= tm_target and _vmem_bytes_estimate(hw, n_e, e_dim) <= vmem_budget:
        return hw
    tm = max(128, (min(tm_target, hw) // 128) * 128)
    while tm > 128 and _vmem_bytes_estimate(tm, n_e, e_dim) > vmem_budget:
        tm -= 128
    return tm


def vector_quantize(z_nchw, embedding, beta=1.0, tm=8192, vmem_budget=32 << 20):
    """Forward pass of VectorQuantizer.

    Args:
      z_nchw: (B, C, H, W) float32, C == e_dim.
      embedding: (n_e, e_dim) float32 codebook.
    Returns:
      (z_q_nchw, loss, (None, None, min_encoding_indices))
      with indices of shape (B, H*W) int32 (torch uses int64).
    """
    B, C, H, W = z_nchw.shape
    n_e, e_dim = embedding.shape
    assert C == e_dim, "channel dim must equal e_dim"
    HW = H * W

    # Free reshape: NCHW is channel-contiguous per batch element.
    z3 = z_nchw.reshape(B, e_dim, HW).astype(jnp.float32)      # (B, e_dim, HW)

    emb = embedding.astype(jnp.float32)
    neg2e = -2.0 * emb                                 # scale folded out of kernel
    emb_t = emb.T                                      # (e_dim, n_e), for the gather
    e2 = jnp.sum(emb * emb, axis=-1, keepdims=True)    # (n_e, 1), hoisted

    tm = _choose_tile(HW, n_e, e_dim, tm, vmem_budget)
    # Keep >= 2 grid steps so both v7x TensorCores get work.
    if B == 1 and pl.cdiv(HW, tm) < 2 and HW > 128:
        tm = max(128, (((HW + 1) // 2) + 127) // 128 * 128)
    n_col = pl.cdiv(HW, tm)
    grid = (B, n_col)

    est = _vmem_bytes_estimate(tm, n_e, e_dim)
    vmem_limit = max(32 << 20, min(2 * est + (8 << 20), 64 << 20))

    zq3, idx3, msd3 = pl.pallas_call(
        _vq_kernel,
        out_shape=(
            jax.ShapeDtypeStruct((B, e_dim, HW), jnp.float32),
            jax.ShapeDtypeStruct((B, 1, HW), jnp.int32),
            jax.ShapeDtypeStruct((B, 1, HW), jnp.float32),
        ),
        grid_spec=pltpu.PrefetchScalarGridSpec(
            num_scalar_prefetch=0,
            grid=grid,
            in_specs=[
                pl.BlockSpec((None, e_dim, tm), lambda b, i: (b, 0, i)),  # z tile
                pl.BlockSpec((n_e, e_dim), lambda b, i: (0, 0)),          # -2E (resident)
                pl.BlockSpec((e_dim, n_e), lambda b, i: (0, 0)),          # E^T (resident)
                pl.BlockSpec((n_e, 1), lambda b, i: (0, 0)),              # ||E||^2
            ],
            out_specs=[
                pl.BlockSpec((None, e_dim, tm), lambda b, i: (b, 0, i)),  # z_q tile
                pl.BlockSpec((None, 1, tm), lambda b, i: (b, 0, i)),      # indices
                pl.BlockSpec((None, 1, tm), lambda b, i: (b, 0, i)),      # sq dist
            ],
        ),
        compiler_params=pltpu.CompilerParams(
            dimension_semantics=("parallel", "parallel"),
            vmem_limit_bytes=int(vmem_limit)),
    )(z3, neg2e, emb_t, e2)

    mse = jnp.sum(msd3) / jnp.float32(B * HW * e_dim)
    # forward value of beta*mean((sg(zq)-z)^2) + mean((zq-sg(z))^2)
    loss = (beta + 1.0) * mse

    # straight-through: z + sg(z_q - z) has forward value z_q; reshape is free.
    z_q_nchw = zq3.reshape(B, e_dim, H, W)
    min_encoding_indices = idx3.reshape(B, HW)
    return z_q_nchw, loss, (None, None, min_encoding_indices)


def _reference(z_nchw, embedding, beta=1.0):
    """Pure-JAX reference matching the PyTorch forward."""
    B, C, H, W = z_nchw.shape
    z = jnp.transpose(z_nchw, (0, 2, 3, 1))
    zf = z.reshape(B, -1, C)
    d = (jnp.sum(zf ** 2, axis=-1, keepdims=True)
         - 2.0 * jnp.einsum('bnd,kd->bnk', zf, embedding)
         + jnp.sum(embedding ** 2, axis=-1)[None, None, :])
    idx = jnp.argmin(d, axis=-1)
    z_q = embedding[idx].reshape(z.shape)
    loss = beta * jnp.mean((z_q - z) ** 2) + jnp.mean((z_q - z) ** 2)
    return jnp.transpose(z_q, (0, 3, 1, 2)), loss, idx


if __name__ == "__main__":
    # Deterministic synthetic params / inputs (no checkpoint loading).
    n_e, e_dim = 16, 8
    B, H, W = 2, 16, 16
    beta = 1.0

    key = jax.random.PRNGKey(0)
    k_emb, k_z = jax.random.split(key)
    # nn.Embedding(n_e, e_dim).weight.data.uniform_(-1/n_e, 1/n_e)
    embedding = jax.random.uniform(
        k_emb, (n_e, e_dim), jnp.float32, minval=-1.0 / n_e, maxval=1.0 / n_e)
    z = jax.random.normal(k_z, (B, e_dim, H, W), jnp.float32)

    fwd = jax.jit(functools.partial(vector_quantize, beta=beta, tm=8192))
    z_q, loss, (_, _, indices) = fwd(z, embedding)
    jax.block_until_ready((z_q, loss, indices))

    # Sanity check against the pure-JAX reference.
    zq_ref, loss_ref, idx_ref = _reference(z, embedding, beta)
    assert jnp.allclose(z_q, zq_ref, atol=1e-5), "z_q mismatch"
    assert jnp.allclose(loss, loss_ref, rtol=1e-4, atol=1e-4), "loss mismatch"
    assert jnp.array_equal(indices, idx_ref.astype(jnp.int32)), "indices mismatch"

    print("KERNEL_OK")
</pallas_src>

<mosaic_0001>
module attributes {stable_mosaic.version = 11 : i64} {
  func.func @_vq_kernel(%arg0: i32, %arg1: i32, %arg2: memref<1x8x256xf32, #tpu.memory_space<vmem>>, %arg3: memref<16x8xf32, #tpu.memory_space<vmem>>, %arg4: memref<8x16xf32, #tpu.memory_space<vmem>>, %arg5: memref<16x1xf32, #tpu.memory_space<vmem>>, %arg6: memref<1x8x256xf32, #tpu.memory_space<vmem>>, %arg7: memref<1x1x256xi32, #tpu.memory_space<vmem>>, %arg8: memref<1x1x256xf32, #tpu.memory_space<vmem>>) attributes {dimension_semantics = [#tpu.dimension_semantics<parallel>, #tpu.dimension_semantics<parallel>], iteration_bounds = array<i64: 2, 1>, scalar_prefetch = 0 : i64, scratch_operands = 0 : i64, tpu.core_type = #tpu.core_type<tc>, window_params = [{transform_indices = @transform_0, window_bounds = array<i64: 1, 8, 256>}, {pipeline_mode = #tpu.pipeline_mode<synchronous>, transform_indices = @transform_1, window_bounds = array<i64: 16, 8>}, {pipeline_mode = #tpu.pipeline_mode<synchronous>, transform_indices = @transform_2, window_bounds = array<i64: 8, 16>}, {pipeline_mode = #tpu.pipeline_mode<synchronous>, transform_indices = @transform_3, window_bounds = array<i64: 16, 1>}, {transform_indices = @transform_4, window_bounds = array<i64: 1, 8, 256>}, {transform_indices = @transform_5, window_bounds = array<i64: 1, 1, 256>}, {transform_indices = @transform_6, window_bounds = array<i64: 1, 1, 256>}]} {
    %c0 = arith.constant 0 : index
    %c0_0 = arith.constant 0 : index
    %c0_1 = arith.constant 0 : index
    %0 = vector.load %arg2[%c0, %c0_0, %c0_1] : memref<1x8x256xf32, #tpu.memory_space<vmem>>, vector<1x8x256xf32>
    %1 = vector.shape_cast %0 : vector<1x8x256xf32> to vector<8x256xf32>
    %c0_2 = arith.constant 0 : index
    %c0_3 = arith.constant 0 : index
    %2 = vector.load %arg3[%c0_2, %c0_3] : memref<16x8xf32, #tpu.memory_space<vmem>>, vector<16x8xf32>
    %c0_4 = arith.constant 0 : index
    %c0_5 = arith.constant 0 : index
    %3 = vector.load %arg4[%c0_4, %c0_5] : memref<8x16xf32, #tpu.memory_space<vmem>>, vector<8x16xf32>
    %c0_6 = arith.constant 0 : index
    %c0_7 = arith.constant 0 : index
    %4 = vector.load %arg5[%c0_6, %c0_7] : memref<16x1xf32, #tpu.memory_space<vmem>>, vector<16x1xf32>
    %cst = arith.constant dense<0.000000e+00> : vector<16x256xf32>
    %5 = tpu.matmul %2, %1, %cst {dimension_numbers = #tpu.dot_dimension_numbers<[1], [0], [0], [1], [0, 0, 1, 1], [], []>} : vector<16x8xf32>, vector<8x256xf32>, vector<16x256xf32> -> vector<16x256xf32>
    %6 = vector.broadcast %4 : vector<16x1xf32> to vector<16x256xf32>
    %7 = arith.addf %5, %6 : vector<16x256xf32>
    %cst_8 = arith.constant dense<0x7F800000> : vector<256xf32>
    %8 = vector.multi_reduction <minimumf>, %7, %cst_8 [0] : vector<16x256xf32> to vector<256xf32>
    %9 = vector.shape_cast %8 : vector<256xf32> to vector<1x256xf32>
    %10 = tpu.iota {dimensions = array<i32: 0>} : vector<16x256xi32>
    %11 = vector.broadcast %9 : vector<1x256xf32> to vector<16x256xf32>
    %12 = arith.cmpf oeq, %7, %11 : vector<16x256xf32>
    %c16_i32 = arith.constant 16 : i32
    %13 = vector.broadcast %c16_i32 : i32 to vector<16x256xi32>
    %14 = arith.select %12, %10, %13 : vector<16x256xi1>, vector<16x256xi32>
    %cst_9 = arith.constant dense<2147483647> : vector<256xi32>
    %15 = vector.multi_reduction <minsi>, %14, %cst_9 [0] : vector<16x256xi32> to vector<256xi32>
    %16 = vector.shape_cast %15 : vector<256xi32> to vector<1x256xi32>
    %17 = vector.broadcast %16 : vector<1x256xi32> to vector<16x256xi32>
    %18 = arith.cmpi eq, %10, %17 : vector<16x256xi32>
    %19 = arith.extui %18 : vector<16x256xi1> to vector<16x256xi32>
    %20 = arith.sitofp %19 : vector<16x256xi32> to vector<16x256xf32>
    %cst_10 = arith.constant dense<0.000000e+00> : vector<8x256xf32>
    %21 = tpu.matmul %3, %20, %cst_10 {dimension_numbers = #tpu.dot_dimension_numbers<[1], [0], [0], [1], [0, 0, 1, 1], [], []>} : vector<8x16xf32>, vector<16x256xf32>, vector<8x256xf32> -> vector<8x256xf32>
    %c0_11 = arith.constant 0 : index
    %c0_12 = arith.constant 0 : index
    %c0_13 = arith.constant 0 : index
    %22 = vector.load %arg6[%c0_11, %c0_12, %c0_13] : memref<1x8x256xf32, #tpu.memory_space<vmem>>, vector<1x8x256xf32>
    %23 = vector.shape_cast %22 : vector<1x8x256xf32> to vector<8x256xf32>
    %24 = vector.shape_cast %21 : vector<8x256xf32> to vector<1x8x256xf32>
    tpu.vector_store %arg6[%c0_11, %c0_12, %c0_13], %24 {strides = array<i32>} : memref<1x8x256xf32, #tpu.memory_space<vmem>>, vector<1x8x256xf32>,
    %c0_14 = arith.constant 0 : index
    %c0_15 = arith.constant 0 : index
    %c0_16 = arith.constant 0 : index
    %25 = vector.load %arg7[%c0_14, %c0_15, %c0_16] : memref<1x1x256xi32, #tpu.memory_space<vmem>>, vector<1x1x256xi32>
    %26 = vector.shape_cast %25 : vector<1x1x256xi32> to vector<1x256xi32>
    %27 = vector.shape_cast %16 : vector<1x256xi32> to vector<1x1x256xi32>
    tpu.vector_store %arg7[%c0_14, %c0_15, %c0_16], %27 {strides = array<i32>} : memref<1x1x256xi32, #tpu.memory_space<vmem>>, vector<1x1x256xi32>,
    %28 = arith.mulf %1, %1 : vector<8x256xf32>
    %cst_17 = arith.constant dense<0.000000e+00> : vector<256xf32>
    %29 = vector.multi_reduction <add>, %28, %cst_17 [0] : vector<8x256xf32> to vector<256xf32>
    %30 = vector.shape_cast %29 : vector<256xf32> to vector<1x256xf32>
    %31 = arith.addf %9, %30 : vector<1x256xf32>
    %cst_18 = arith.constant 0.000000e+00 : f32
    %32 = vector.broadcast %cst_18 : f32 to vector<1x256xf32>
    %33 = arith.maximumf %31, %32 : vector<1x256xf32>
    %c0_19 = arith.constant 0 : index
    %c0_20 = arith.constant 0 : index
    %c0_21 = arith.constant 0 : index
    %34 = vector.load %arg8[%c0_19, %c0_20, %c0_21] : memref<1x1x256xf32, #tpu.memory_space<vmem>>, vector<1x1x256xf32>
    %35 = vector.shape_cast %34 : vector<1x1x256xf32> to vector<1x256xf32>
    %36 = vector.shape_cast %33 : vector<1x256xf32> to vector<1x1x256xf32>
    tpu.vector_store %arg8[%c0_19, %c0_20, %c0_21], %36 {strides = array<i32>} : memref<1x1x256xf32, #tpu.memory_space<vmem>>, vector<1x1x256xf32>,
    return
  }
  func.func @transform_0(%arg0: i32, %arg1: i32) -> (i32, i32, i32) {
    %c0_i32 = arith.constant 0 : i32
    %c0_i32_0 = arith.constant 0 : i32
    return %arg0, %c0_i32, %arg1 : i32, i32, i32
  }
  func.func @transform_1(%arg0: i32, %arg1: i32) -> (i32, i32) {
    %c0_i32 = arith.constant 0 : i32
    %c0_i32_0 = arith.constant 0 : i32
    %c0_i32_1 = arith.constant 0 : i32
    return %c0_i32, %c0_i32_0 : i32, i32
  }
  func.func @transform_2(%arg0: i32, %arg1: i32) -> (i32, i32) {
    %c0_i32 = arith.constant 0 : i32
    %c0_i32_0 = arith.constant 0 : i32
    %c0_i32_1 = arith.constant 0 : i32
    return %c0_i32, %c0_i32_0 : i32, i32
  }
  func.func @transform_3(%arg0: i32, %arg1: i32) -> (i32, i32) {
    %c0_i32 = arith.constant 0 : i32
    %c0_i32_0 = arith.constant 0 : i32
    %c0_i32_1 = arith.constant 0 : i32
    return %c0_i32, %c0_i32_0 : i32, i32
  }
  func.func @transform_4(%arg0: i32, %arg1: i32) -> (i32, i32, i32) {
    %c0_i32 = arith.constant 0 : i32
    %c0_i32_0 = arith.constant 0 : i32
    return %arg0, %c0_i32, %arg1 : i32, i32, i32
  }
  func.func @transform_5(%arg0: i32, %arg1: i32) -> (i32, i32, i32) {
    %c0_i32 = arith.constant 0 : i32
    %c0_i32_0 = arith.constant 0 : i32
    return %arg0, %c0_i32, %arg1 : i32, i32, i32
  }
  func.func @transform_6(%arg0: i32, %arg1: i32) -> (i32, i32, i32) {
    %c0_i32 = arith.constant 0 : i32
    %c0_i32_0 = arith.constant 0 : i32
    return %arg0, %c0_i32, %arg1 : i32, i32, i32
  }
}

</mosaic_0001>

<llo_original>
// kernel: vector_quantize.1
$region0: #{vector_quantize.1}
  #allocation0 [shape = 'u32[]', space=smem, size = 0x4, offset = 0x4, fixed_abs, tag = 'smem constant byte address 0x4 - core index']
  #allocation1 [shape = 'u32[72,128]{1,0:T(1,128)}', space=vmem, size = 0x9000, scoped, tag = 'internal scratch']
  %s0 = inlined_call_operand.vmem [shape: f32[2,8,256], index: 0, kind: input, shape index: {}]
  %s1 = inlined_call_operand.vmem [shape: f32[16,8], index: 1, kind: input, shape index: {}]
  %s2 = inlined_call_operand.vmem [shape: f32[8,16], index: 2, kind: input, shape index: {}]
  %s3 = inlined_call_operand.vmem [shape: f32[16,1], index: 3, kind: input, shape index: {}]
  %s4 = inlined_call_operand.vmem [shape: f32[2,8,256], index: 4, kind: output, shape index: {0}]
  %s5 = inlined_call_operand.vmem [shape: s32[2,1,256], index: 5, kind: output, shape index: {1}]
  %s6 = inlined_call_operand.vmem [shape: f32[2,1,256], index: 6, kind: output, shape index: {2}]
  %7 = xla_tuple %s4, %s5, %s6
  %s8 = sld [smem:[#allocation0]]
  $region65: #{vector_quantize.1} parent=0
    _
  %s10 = ssub.s32 1, %s8
  %s11 = scalar_select 0, %s10, %s8
  loop: start=0, step=1, limit=4
  $region2: #{vector_quantize.1} parent=0 // loop_pre_header
    _
  $region3: #{vector_quantize.1} parent=0 // loop_header
    %s13 = sphi 0, %s17
    %p14 = scmp.ge.s32.totalorder %s13, 4
    %s20 = sphi 0, %s32
    %s21 = sphi 0, %s28
    %s22 = sphi 0, %s20
    %s23 = sphi 0, %s21
    %s24 = sphi 0, %s22
    %s25 = sphi 0, %s23
    %s37 = sphi 0, %s39
    %s40 = sphi 0, %s37
    %s41 = sphi 0, %s40
    %s57 = sphi 0, %s41
    %s61 = sphi 0, %s61
    %s63 = sphi 0, %s61
    %s64 = sphi 0, %s63
    %s78 = sphi 0, %s64
    %s82 = sphi 0, %s82
    %s84 = sphi 0, %s82
    %s85 = sphi 0, %s84
    %s99 = sphi 0, %s85
    %s103 = sphi 0, %s103
    %s105 = sphi 0, %s103
    %s106 = sphi 0, %s105
    %s120 = sphi 0, %s106
    %s128 = sphi 0, %s130
    %s131 = sphi 0, %s128
    %s132 = sphi 0, %s131
    %s148 = sphi 0, %s132
    %s156 = sphi 0, %s158
    %s159 = sphi 0, %s156
    %s160 = sphi 0, %s159
    %s176 = sphi 0, %s160
    %s184 = sphi 0, %s186
    %s187 = sphi 0, %s184
    %s188 = sphi 0, %s187
    %s204 = sphi 0, %s188
  $region4: #{vector_quantize.1} parent=0 // loop_header_branch
    %16 = sbr.rel (%p14) target = $region8
  $region5: #{vector_quantize.1} parent=0 // loop_body
    %s18 = ssub.s32 %s13, 1
    %s19 = ssub.s32 %s13, 2
    %s26 = sadd.s32 1, %s21
    %p27 = scmp.ge.s32.totalorder %s26, 1
    %s28 = scalar_select %p27, 0, %s26
    %s29 = sadd.s32 1, %s20
    %s30 = scalar_select %p27, %s29, %s20
    %p31 = scmp.ge.s32.totalorder %s30, 2
    %s32 = scalar_select %p31, 0, %s30
    %s33 = ssub.s32 %s20, %s32
    %s34 = ssub.s32 %s21, %s28
    %s35 = sor.u32 %s33, %s34
    %p36 = scmp.eq.s32.totalorder %s35, 0
    %s38 = sadd.s32 %s37, 1
    %s39 = scalar_select %p36, %s37, %s38
    %p42 = pneg %p36
    %p43 = scmp.eq.s32.totalorder %s13, 1
    %p44 = por %p42, %p43
    %p45 = scmp.ne.s32.totalorder %s37, %s40
    %p46 = scmp.eq.s32.totalorder %s13, 0
    %p47 = por %p45, %p46
    %p48 = scmp.ne.s32.totalorder %s37, %s40
    %p49 = scmp.eq.s32.totalorder %s18, 1
    %p50 = por %p48, %p49
    %p51 = scmp.ne.s32.totalorder %s40, %s41
    %p52 = scmp.eq.s32.totalorder %s18, 0
    %p53 = por %p51, %p52
    %p54 = scmp.ne.s32.totalorder %s40, %s41
    %p55 = scmp.eq.s32.totalorder %s19, 1
    %p56 = por %p54, %p55
    %p58 = scmp.ne.s32.totalorder %s41, %s57
    %p59 = scmp.eq.s32.totalorder %s19, 0
    %p60 = por %p58, %p59
    %s62 = sadd.s32 %s61, 1
    %p65 = scmp.eq.s32.totalorder %s13, 1
    %p66 = scmp.ne.s32.totalorder %s61, %s63
    %p67 = scmp.eq.s32.totalorder %s13, 0
    %p68 = por %p66, %p67
    %p69 = scmp.ne.s32.totalorder %s61, %s63
    %p70 = scmp.eq.s32.totalorder %s18, 1
    %p71 = por %p69, %p70
    %p72 = scmp.ne.s32.totalorder %s63, %s64
    %p73 = scmp.eq.s32.totalorder %s18, 0
    %p74 = por %p72, %p73
    %p75 = scmp.ne.s32.totalorder %s63, %s64
    %p76 = scmp.eq.s32.totalorder %s19, 1
    %p77 = por %p75, %p76
    %p79 = scmp.ne.s32.totalorder %s64, %s78
    %p80 = scmp.eq.s32.totalorder %s19, 0
    %p81 = por %p79, %p80
    %s83 = sadd.s32 %s82, 1
    %p86 = scmp.eq.s32.totalorder %s13, 1
    %p87 = scmp.ne.s32.totalorder %s82, %s84
    %p88 = scmp.eq.s32.totalorder %s13, 0
    %p89 = por %p87, %p88
    %p90 = scmp.ne.s32.totalorder %s82, %s84
    %p91 = scmp.eq.s32.totalorder %s18, 1
    %p92 = por %p90, %p91
    %p93 = scmp.ne.s32.totalorder %s84, %s85
    %p94 = scmp.eq.s32.totalorder %s18, 0
    %p95 = por %p93, %p94
    %p96 = scmp.ne.s32.totalorder %s84, %s85
    %p97 = scmp.eq.s32.totalorder %s19, 1
    %p98 = por %p96, %p97
    %p100 = scmp.ne.s32.totalorder %s85, %s99
    %p101 = scmp.eq.s32.totalorder %s19, 0
    %p102 = por %p100, %p101
    %s104 = sadd.s32 %s103, 1
    %p107 = scmp.eq.s32.totalorder %s13, 1
    %p108 = scmp.ne.s32.totalorder %s103, %s105
    %p109 = scmp.eq.s32.totalorder %s13, 0
    %p110 = por %p108, %p109
    %p111 = scmp.ne.s32.totalorder %s103, %s105
    %p112 = scmp.eq.s32.totalorder %s18, 1
    %p113 = por %p111, %p112
    %p114 = scmp.ne.s32.totalorder %s105, %s106
    %p115 = scmp.eq.s32.totalorder %s18, 0
    %p116 = por %p114, %p115
    %p117 = scmp.ne.s32.totalorder %s105, %s106
    %p118 = scmp.eq.s32.totalorder %s19, 1
    %p119 = por %p117, %p118
    %p121 = scmp.ne.s32.totalorder %s106, %s120
    %p122 = scmp.eq.s32.totalorder %s19, 0
    %p123 = por %p121, %p122
    %s124 = ssub.s32 %s20, %s32
    %s125 = ssub.s32 %s21, %s28
    %s126 = sor.u32 %s124, %s125
    %p127 = scmp.eq.s32.totalorder %s126, 0
    %s129 = sadd.s32 %s128, 1
    %s130 = scalar_select %p127, %s128, %s129
    %p133 = pneg %p127
    %p134 = scmp.eq.s32.totalorder %s13, 1
    %p135 = por %p133, %p134
    %p136 = scmp.ne.s32.totalorder %s128, %s131
    %p137 = scmp.eq.s32.totalorder %s13, 0
    %p138 = por %p136, %p137
    %p139 = scmp.ne.s32.totalorder %s128, %s131
    %p140 = scmp.eq.s32.totalorder %s18, 1
    %p141 = por %p139, %p140
    %p142 = scmp.ne.s32.totalorder %s131, %s132
    %p143 = scmp.eq.s32.totalorder %s18, 0
    %p144 = por %p142, %p143
    %p145 = scmp.ne.s32.totalorder %s131, %s132
    %p146 = scmp.eq.s32.totalorder %s19, 1
    %p147 = por %p145, %p146
    %p149 = scmp.ne.s32.totalorder %s132, %s148
    %p150 = scmp.eq.s32.totalorder %s19, 0
    %p151 = por %p149, %p150
    %s152 = ssub.s32 %s20, %s32
    %s153 = ssub.s32 %s21, %s28
    %s154 = sor.u32 %s152, %s153
    %p155 = scmp.eq.s32.totalorder %s154, 0
    %s157 = sadd.s32 %s156, 1
    %s158 = scalar_select %p155, %s156, %s157
    %p161 = pneg %p155
    %p162 = scmp.eq.s32.totalorder %s13, 1
    %p163 = por %p161, %p162
    %p164 = scmp.ne.s32.totalorder %s156, %s159
    %p165 = scmp.eq.s32.totalorder %s13, 0
    %p166 = por %p164, %p165
    %p167 = scmp.ne.s32.totalorder %s156, %s159
    %p168 = scmp.eq.s32.totalorder %s18, 1
    %p169 = por %p167, %p168
    %p170 = scmp.ne.s32.totalorder %s159, %s160
    %p171 = scmp.eq.s32.totalorder %s18, 0
    %p172 = por %p170, %p171
    %p173 = scmp.ne.s32.totalorder %s159, %s160
    %p174 = scmp.eq.s32.totalorder %s19, 1
    %p175 = por %p173, %p174
    %p177 = scmp.ne.s32.totalorder %s160, %s176
    %p178 = scmp.eq.s32.totalorder %s19, 0
    %p179 = por %p177, %p178
    %s180 = ssub.s32 %s20, %s32
    %s181 = ssub.s32 %s21, %s28
    %s182 = sor.u32 %s180, %s181
    %p183 = scmp.eq.s32.totalorder %s182, 0
    %s185 = sadd.s32 %s184, 1
    %s186 = scalar_select %p183, %s184, %s185
    %p189 = pneg %p183
    %p190 = scmp.eq.s32.totalorder %s13, 1
    %p191 = por %p189, %p190
    %p192 = scmp.ne.s32.totalorder %s184, %s187
    %p193 = scmp.eq.s32.totalorder %s13, 0
    %p194 = por %p192, %p193
    %p195 = scmp.ne.s32.totalorder %s184, %s187
    %p196 = scmp.eq.s32.totalorder %s18, 1
    %p197 = por %p195, %p196
    %p198 = scmp.ne.s32.totalorder %s187, %s188
    %p199 = scmp.eq.s32.totalorder %s18, 0
    %p200 = por %p198, %p199
    %p201 = scmp.ne.s32.totalorder %s187, %s188
    %p202 = scmp.eq.s32.totalorder %s19, 1
    %p203 = por %p201, %p202
    %p205 = scmp.ne.s32.totalorder %s188, %s204
    %p206 = scmp.eq.s32.totalorder %s19, 0
    %p207 = por %p205, %p206
    %p208 = scmp.le.s32.totalorder 1, %s13
    %p209 = scmp.lt.s32.totalorder %s13, 3
    %p210 = pnand %p208, %p209
    %p211 = pneg %p210
    // Predicated region
    $region9: #{vector_quantize.1} parent=5 // pred_check
      _
    $region10: #{vector_quantize.1} parent=5 // pred_check_branch
      %213 = sbr.rel (%p210) target = $region12
    $region11: #{vector_quantize.1} parent=5 // pred_region
      %s214 = ssub.s32 %s13, 1
      // Predicated region
      $region13: #{vector_quantize.1} parent=11 // pred_check
        %p215 = pneg %p74
      $region14: #{vector_quantize.1} parent=11 // pred_check_branch
        %217 = sbr.rel (%p215) target = $region16
      $region15: #{vector_quantize.1} parent=11 // pred_region
        _
      $region16: #{vector_quantize.1} parent=11 // pred_fallthru
        _
      // Predicated region
      $region17: #{vector_quantize.1} parent=11 // pred_check
        %p218 = pneg %p95
      $region18: #{vector_quantize.1} parent=11 // pred_check_branch
        %220 = sbr.rel (%p218) target = $region20
      $region19: #{vector_quantize.1} parent=11 // pred_region
        _
      $region20: #{vector_quantize.1} parent=11 // pred_fallthru
        _
      // Predicated region
      $region21: #{vector_quantize.1} parent=11 // pred_check
        %p221 = pneg %p116
      $region22: #{vector_quantize.1} parent=11 // pred_check_branch
        %223 = sbr.rel (%p221) target = $region24
      $region23: #{vector_quantize.1} parent=11 // pred_region
        _
      $region24: #{vector_quantize.1} parent=11 // pred_fallthru
        _
    $region12: #{vector_quantize.1} parent=5 // pred_fallthru
      _
    %p224 = scmp.lt.s32.totalorder %s13, 2
    // Predicated region
    $region25: #{vector_quantize.1} parent=5 // pred_check
      %p225 = pneg %p224
    $region26: #{vector_quantize.1} parent=5 // pred_check_branch
      %227 = sbr.rel (%p225) target = $region28
    $region27: #{vector_quantize.1} parent=5 // pred_region
      // Predicated region
      $region29: #{vector_quantize.1} parent=27 // pred_check
        %p228 = pneg %p47
      $region30: #{vector_quantize.1} parent=27 // pred_check_branch
        %230 = sbr.rel (%p228) target = $region32
      $region31: #{vector_quantize.1} parent=27 // pred_region
        %s231 = smul.u32 2, %s21
        %p232 = scmp.lt.s32.totalorder %s20, 1
        %s233 = scalar_select %p232, %s20, 1
        %p234 = scmp.lt.s32.totalorder %s231, 1
        %s235 = scalar_select %p234, %s231, 1
        %s236 = smul.addr %s233, 2
        %s237 = sadd.s32 %s235, %s236
        %s238 = smul.addr %s237, 8
        %s239 = scalar_lea.vmem %s0, %s238
        %s240 = smul.u32 2, %s21
      $region32: #{vector_quantize.1} parent=27 // pred_fallthru
        _
    $region28: #{vector_quantize.1} parent=5 // pred_fallthru
      _
    %p241 = scmp.le.s32.totalorder 1, %s13
    %p242 = scmp.lt.s32.totalorder %s13, 3
    %p243 = pnand %p241, %p242
    %p244 = pneg %p243
    // Predicated region
    $region33: #{vector_quantize.1} parent=5 // pred_check
      _
    $region34: #{vector_quantize.1} parent=5 // pred_check_branch
      %246 = sbr.rel (%p243) target = $region36
    $region35: #{vector_quantize.1} parent=5 // pred_region
      %s247 = ssub.s32 %s13, 1
      %s248 = smul.u32 2, %s23
      %p249 = scmp.lt.s32.totalorder %s22, 1
      %s250 = scalar_select %p249, %s22, 1
      %p251 = scmp.lt.s32.totalorder %s248, 1
      %s252 = scalar_select %p251, %s248, 1
      %s253 = smul.addr %s250, 2
      %s254 = sadd.s32 %s252, %s253
      %s255 = smul.addr %s254, 8
      %s256 = scalar_lea.vmem %s0, %s255
      %p257 = pneg %p53
      %p258 = pneg %p50
      %p259 = pneg %p74
      %p260 = pneg %p71
      %p261 = pneg %p95
      %p262 = pneg %p92
      %p263 = pneg %p116
      %p264 = pneg %p113
      %p265 = pneg %p144
      %p266 = pneg %p141
      %s267 = smul.u32 2, %s23
      %p268 = scmp.lt.s32.totalorder %s22, 1
      %s269 = scalar_select %p268, %s22, 1
      %p270 = scmp.lt.s32.totalorder %s267, 1
      %s271 = scalar_select %p270, %s267, 1
      %s272 = smul.addr %s269, 2
      %s273 = sadd.s32 %s271, %s272
      %s274 = smul.addr %s273, 8
      %s275 = scalar_lea.vmem %s4, %s274
      %p276 = pneg %p172
      %p277 = pneg %p169
      %s278 = smul.u32 2, %s23
      %p279 = scmp.lt.s32.totalorder %s22, 1
      %s280 = scalar_select %p279, %s22, 1
      %p281 = scmp.lt.s32.totalorder %s278, 1
      %s282 = scalar_select %p281, %s278, 1
      %s283 = smul.addr %s280, 2
      %s284 = sadd.s32 %s282, %s283
      %s285 = scalar_lea.vmem %s5, %s284
      %p286 = pneg %p200
      %p287 = pneg %p197
      %s288 = smul.u32 2, %s23
      %p289 = scmp.lt.s32.totalorder %s22, 1
      %s290 = scalar_select %p289, %s22, 1
      %p291 = scmp.lt.s32.totalorder %s288, 1
      %s292 = scalar_select %p291, %s288, 1
      %s293 = smul.addr %s290, 2
      %s294 = sadd.s32 %s292, %s293
      %s295 = scalar_lea.vmem %s6, %s294
      %s296 = smul.u32 2, %s23
      %p297 = scmp.lt.s32.totalorder %s22, 1
      %s298 = scalar_select %p297, %s22, 1
      %p299 = scmp.lt.s32.totalorder %s296, 1
      %s300 = scalar_select %p299, %s296, 1
      %s301 = smul.addr %s298, 2
      %s302 = sadd.s32 %s300, %s301
      %s303 = smul.addr %s302, 8
      %s304 = scalar_lea.vmem %s0, %s303
      %s305 = smul.u32 2, %s23
      %s306 = smul.u32 2, %s23
      %p307 = scmp.lt.s32.totalorder %s22, 1
      %s308 = scalar_select %p307, %s22, 1
      %p309 = scmp.lt.s32.totalorder %s306, 1
      %s310 = scalar_select %p309, %s306, 1
      %s311 = smul.addr %s308, 2
      %s312 = sadd.s32 %s310, %s311
      %s313 = smul.addr %s312, 8
      %s314 = scalar_lea.vmem %s4, %s313
      %s315 = smul.u32 2, %s23
      %s316 = smul.u32 2, %s23
      %p317 = scmp.lt.s32.totalorder %s22, 1
      %s318 = scalar_select %p317, %s22, 1
      %p319 = scmp.lt.s32.totalorder %s316, 1
      %s320 = scalar_select %p319, %s316, 1
      %s321 = smul.addr %s318, 2
      %s322 = sadd.s32 %s320, %s321
      %s323 = scalar_lea.vmem %s5, %s322
      %s324 = smul.u32 2, %s23
      %s325 = smul.u32 2, %s23
      %p326 = scmp.lt.s32.totalorder %s22, 1
      %s327 = scalar_select %p326, %s22, 1
      %p328 = scmp.lt.s32.totalorder %s325, 1
      %s329 = scalar_select %p328, %s325, 1
      %s330 = smul.addr %s327, 2
      %s331 = sadd.s32 %s329, %s330
      %s332 = scalar_lea.vmem %s6, %s331
      %s333 = smul.u32 2, %s23
      %v334 = vld [vmem:[%s304] sm:$0xff]
      %v335 = vld [vmem:[%s304 + $0x8] sm:$0xff]
      %v336 = vld [vmem:[%s1] sm:$0xff]
      %v337 = vld [vmem:[%s1 + $0x8] sm:$0xff]
      %v338 = vld [vmem:[%s2] sm:$0xff]
      %v339 = vld [vmem:[%s3] sm:$0xff]
      %v340 = vld [vmem:[%s3 + $0x8] sm:$0xff]
      %342 = vset.pattern.permute.xlu0 0
      %343 = vperm.xlu0 %342, %v339
      %v344 = vpop.permute.xlu0 %343
      %347 = vset.pattern.permute.xlu0 0
      %348 = vperm.xlu0 %347, %v340
      %v349 = vpop.permute.xlu0 %348
      %vm351 = vcmask 64512
      %v353 = vsel %vm351, %v336, 0
      %v356 = vsel %vm351, %v337, 0
      %358 = vmatpush.msra.mxu0 0.0
      %359 = vmatpush.msra.mxu0 0.0
      %360 = vmatpush.msra.mxu0 0.0
      %361 = vmatpush.msra.mxu0 0.0
      %362 = vmatpush.msra.mxu0 0.0
      %363 = vmatpush.msra.mxu0 0.0
      %364 = vmatpush.msra.mxu0 0.0
      %365 = vmatpush.msra.mxu0 0.0
      %366 = vmatpush.msra.mxu0 0.0
      %367 = vmatpush.msra.mxu0 0.0
      %368 = vmatpush.msra.mxu0 0.0
      %369 = vmatpush.msra.mxu0 0.0
      %370 = vmatpush.msra.mxu0 0.0
      %371 = vmatpush.msra.mxu0 0.0
      %372 = vmatpush.msra.mxu0 0.0
      %373 = vmatpush.msra.mxu0 %v334
      %374 = vmatmul.f32.gmra.mxu0 %v353
      %v375 = vpop.f32.mrf.mxu0
      %v376 = vadd.f32 %v344, %v375
      %377 = vmatmul.f32.gmra.mxu0 %v356
      %v378 = vpop.f32.mrf.mxu0
      %v379 = vadd.f32 %v349, %v378
      %380 = vdwg.mxu0
      %381 = vmatpush.msra.mxu0 0.0
      %382 = vmatpush.msra.mxu0 0.0
      %383 = vmatpush.msra.mxu0 0.0
      %384 = vmatpush.msra.mxu0 0.0
      %385 = vmatpush.msra.mxu0 0.0
      %386 = vmatpush.msra.mxu0 0.0
      %387 = vmatpush.msra.mxu0 0.0
      %388 = vmatpush.msra.mxu0 0.0
      %389 = vmatpush.msra.mxu0 0.0
      %390 = vmatpush.msra.mxu0 0.0
      %391 = vmatpush.msra.mxu0 0.0
      %392 = vmatpush.msra.mxu0 0.0
      %393 = vmatpush.msra.mxu0 0.0
      %394 = vmatpush.msra.mxu0 0.0
      %395 = vmatpush.msra.mxu0 0.0
      %396 = vmatpush.msra.mxu0 %v335
      %397 = vmatmul.f32.gmra.mxu0 %v353
      %v398 = vpop.f32.mrf.mxu0
      %v399 = vadd.f32 %v344, %v398
      %400 = vmatmul.f32.gmra.mxu0 %v356
      %v401 = vpop.f32.mrf.mxu0
      %v402 = vadd.f32 %v349, %v401
      %403 = vdwg.mxu0
      %v404 = vmin.f32 %v376, %v379
      %v405 = vrot.slane %v404, 4
      %v406 = vmin.f32 %v404, %v405
      %v407 = vrot.slane %v406, 2
      %v408 = vmin.f32 %v406, %v407
      %v409 = vrot.slane %v408, 1
      %v410 = vmin.f32 %v408, %v409
      %v411 = vmin.f32 %v399, %v402
      %v412 = vrot.slane %v411, 4
      %v413 = vmin.f32 %v411, %v412
      %v414 = vrot.slane %v413, 2
      %v415 = vmin.f32 %v413, %v414
      %v416 = vrot.slane %v415, 1
      %v417 = vmin.f32 %v415, %v416
      %v418 = vlaneseq
      %v419 = vshrl.u32 %v418, 7
      %v420 = vadd.s32 %v419, 8
      %vm421 = vcmp.eq.f32.partialorder %v376, %v410
      %vm422 = vcmp.eq.f32.partialorder %v399, %v417
      %vm423 = vcmp.eq.f32.partialorder %v379, %v410
      %vm424 = vcmp.eq.f32.partialorder %v402, %v417
      %v425 = vsel %vm421, %v419, 16
      %v426 = vsel %vm422, %v419, 16
      %v427 = vsel %vm423, %v420, 16
      %v428 = vsel %vm424, %v420, 16
      %vm429 = vcmp.lt.s32.totalorder %v425, %v427
      %v430 = vsel %vm429, %v425, %v427
      %v431 = vrot.slane %v430, 4
      %vm432 = vcmp.lt.s32.totalorder %v430, %v431
      %v433 = vsel %vm432, %v430, %v431
      %v434 = vrot.slane %v433, 2
      %vm435 = vcmp.lt.s32.totalorder %v433, %v434
      %v436 = vsel %vm435, %v433, %v434
      %v437 = vrot.slane %v436, 1
      %vm438 = vcmp.lt.s32.totalorder %v436, %v437
      %v439 = vsel %vm438, %v436, %v437
      %vm440 = vcmp.lt.s32.totalorder %v426, %v428
      %v441 = vsel %vm440, %v426, %v428
      %v442 = vrot.slane %v441, 4
      %vm443 = vcmp.lt.s32.totalorder %v441, %v442
      %v444 = vsel %vm443, %v441, %v442
      %v445 = vrot.slane %v444, 2
      %vm446 = vcmp.lt.s32.totalorder %v444, %v445
      %v447 = vsel %vm446, %v444, %v445
      %v448 = vrot.slane %v447, 1
      %vm449 = vcmp.lt.s32.totalorder %v447, %v448
      %v450 = vsel %vm449, %v447, %v448
      %vm451 = vcmp.eq.s32.totalorder %v419, %v439
      %vm452 = vcmp.eq.s32.totalorder %v419, %v450
      %vm453 = vcmp.eq.s32.totalorder %v420, %v439
      %vm454 = vcmp.eq.s32.totalorder %v420, %v450
      %v455 = vsel %vm451, 1, 0
      %v456 = vsel %vm452, 1, 0
      %v457 = vsel %vm453, 1, 0
      %v458 = vsel %vm454, 1, 0
      %v459 = vcvt.s32.f32 %v455
      %v460 = vcvt.s32.f32 %v456
      %v461 = vcvt.s32.f32 %v457
      %v462 = vcvt.s32.f32 %v458
      %vm463 = vcmask 130048
      %v465 = vsel %vm463, %v338, 0
      %467 = vmatpush.msra.mxu0 0.0
      %468 = vmatpush.msra.mxu0 0.0
      %469 = vmatpush.msra.mxu0 0.0
      %470 = vmatpush.msra.mxu0 0.0
      %471 = vmatpush.msra.mxu0 0.0
      %472 = vmatpush.msra.mxu0 0.0
      %473 = vmatpush.msra.mxu0 0.0
      %474 = vmatpush.msra.mxu0 0.0
      %475 = vmatpush.msra.mxu0 0.0
      %476 = vmatpush.msra.mxu0 0.0
      %477 = vmatpush.msra.mxu0 0.0
      %478 = vmatpush.msra.mxu0 0.0
      %479 = vmatpush.msra.mxu0 0.0
      %480 = vmatpush.msra.mxu0 0.0
      %481 = vmatpush.msra.mxu0 %v461
      %482 = vmatpush.msra.mxu0 %v459
      %483 = vmatmul.f32.gmra.mxu0 %v465
      %v484 = vpop.f32.mrf.mxu0
      %v485 = vadd.f32 0.0, %v484
      %486 = vdwg.mxu0
      %487 = vmatpush.msra.mxu0 0.0
      %488 = vmatpush.msra.mxu0 0.0
      %489 = vmatpush.msra.mxu0 0.0
      %490 = vmatpush.msra.mxu0 0.0
      %491 = vmatpush.msra.mxu0 0.0
      %492 = vmatpush.msra.mxu0 0.0
      %493 = vmatpush.msra.mxu0 0.0
      %494 = vmatpush.msra.mxu0 0.0
      %495 = vmatpush.msra.mxu0 0.0
      %496 = vmatpush.msra.mxu0 0.0
      %497 = vmatpush.msra.mxu0 0.0
      %498 = vmatpush.msra.mxu0 0.0
      %499 = vmatpush.msra.mxu0 0.0
      %500 = vmatpush.msra.mxu0 0.0
      %501 = vmatpush.msra.mxu0 %v462
      %502 = vmatpush.msra.mxu0 %v460
      %503 = vmatmul.f32.gmra.mxu0 %v465
      %v504 = vpop.f32.mrf.mxu0
      %v505 = vadd.f32 0.0, %v504
      %506 = vdwg.mxu0
      %507 = vst [vmem:[%s314] sm:$0xff] %v485
      %508 = vst [vmem:[%s314 + $0x8] sm:$0xff] %v505
      %v509 = vrot.slane %v450, 7
      %vm510 = vcmask 1040384
      %v511 = vsel %vm510, %v439, %v509
      %v512 = vlaneseq
      %vm513 = vcmp.ge.s32.totalorder %v512, 0
      %vm514 = vcmp.lt.s32.totalorder %v512, 256
      %vm515 = vmand %vm513, %vm514
      %516 = vst.msk [vmem:[%s323] sm:$0x3] %vm515, %v511
      %v517 = vmul.f32 %v334, %v334
      %v518 = vmul.f32 %v335, %v335
      %v519 = vrot.slane %v517, 4
      %v520 = vadd.f32 %v517, %v519
      %v521 = vrot.slane %v520, 2
      %v522 = vadd.f32 %v520, %v521
      %v523 = vrot.slane %v522, 1
      %v524 = vadd.f32 %v522, %v523
      %v525 = vrot.slane %v518, 4
      %v526 = vadd.f32 %v518, %v525
      %v527 = vrot.slane %v526, 2
      %v528 = vadd.f32 %v526, %v527
      %v529 = vrot.slane %v528, 1
      %v530 = vadd.f32 %v528, %v529
      %v531 = vadd.f32 %v410, %v524
      %v532 = vadd.f32 %v417, %v530
      %v533 = vmax.f32 %v531, 0.0
      %v534 = vmax.f32 %v532, 0.0
      %v537 = vrot.slane %v534, 7
      %v538 = vsel %vm510, %v533, %v537
      %540 = vst.msk [vmem:[%s332] sm:$0x3] %vm515, %v538
      %s541 = smul.u32 2, %s23
      %p542 = scmp.lt.s32.totalorder %s22, 1
      %s543 = scalar_select %p542, %s22, 1
      %p544 = scmp.lt.s32.totalorder %s541, 1
      %s545 = scalar_select %p544, %s541, 1
      %s546 = smul.addr %s543, 2
      %s547 = sadd.s32 %s545, %s546
      %s548 = smul.addr %s547, 8
      %s549 = scalar_lea.vmem %s4, %s548
      %s550 = smul.u32 2, %s23
      %p551 = scmp.lt.s32.totalorder %s22, 1
      %s552 = scalar_select %p551, %s22, 1
      %p553 = scmp.lt.s32.totalorder %s550, 1
      %s554 = scalar_select %p553, %s550, 1
      %s555 = smul.addr %s552, 2
      %s556 = sadd.s32 %s554, %s555
      %s557 = scalar_lea.vmem %s5, %s556
      %s558 = smul.u32 2, %s23
      %p559 = scmp.lt.s32.totalorder %s22, 1
      %s560 = scalar_select %p559, %s22, 1
      %p561 = scmp.lt.s32.totalorder %s558, 1
      %s562 = scalar_select %p561, %s558, 1
      %s563 = smul.addr %s560, 2
      %s564 = sadd.s32 %s562, %s563
      %s565 = scalar_lea.vmem %s6, %s564
      // Predicated region
      $region37: #{vector_quantize.1} parent=35 // pred_check
        %p566 = pneg %p141
      $region38: #{vector_quantize.1} parent=35 // pred_check_branch
        %568 = sbr.rel (%p566) target = $region40
      $region39: #{vector_quantize.1} parent=35 // pred_region
        %s569 = smul.u32 2, %s23
      $region40: #{vector_quantize.1} parent=35 // pred_fallthru
        _
      // Predicated region
      $region41: #{vector_quantize.1} parent=35 // pred_check
        %p570 = pneg %p169
      $region42: #{vector_quantize.1} parent=35 // pred_check_branch
        %572 = sbr.rel (%p570) target = $region44
      $region43: #{vector_quantize.1} parent=35 // pred_region
        %s573 = smul.u32 2, %s23
      $region44: #{vector_quantize.1} parent=35 // pred_fallthru
        _
      // Predicated region
      $region45: #{vector_quantize.1} parent=35 // pred_check
        %p574 = pneg %p197
      $region46: #{vector_quantize.1} parent=35 // pred_check_branch
        %576 = sbr.rel (%p574) target = $region48
      $region47: #{vector_quantize.1} parent=35 // pred_region
        %s577 = smul.u32 2, %s23
      $region48: #{vector_quantize.1} parent=35 // pred_fallthru
        _
    $region36: #{vector_quantize.1} parent=5 // pred_fallthru
      _
    %p578 = scmp.le.s32.totalorder 2, %s13
    // Predicated region
    $region49: #{vector_quantize.1} parent=5 // pred_check
      %p579 = pneg %p578
    $region50: #{vector_quantize.1} parent=5 // pred_check_branch
      %581 = sbr.rel (%p579) target = $region52
    $region51: #{vector_quantize.1} parent=5 // pred_region
      %s582 = ssub.s32 %s13, 2
      // Predicated region
      $region53: #{vector_quantize.1} parent=51 // pred_check
        %p583 = pneg %p147
      $region54: #{vector_quantize.1} parent=51 // pred_check_branch
        %585 = sbr.rel (%p583) target = $region56
      $region55: #{vector_quantize.1} parent=51 // pred_region
        %s586 = smul.u32 2, %s25
        %p587 = scmp.lt.s32.totalorder %s24, 1
        %s588 = scalar_select %p587, %s24, 1
        %p589 = scmp.lt.s32.totalorder %s586, 1
        %s590 = scalar_select %p589, %s586, 1
        %s591 = smul.addr %s588, 2
        %s592 = sadd.s32 %s590, %s591
        %s593 = smul.addr %s592, 8
        %s594 = scalar_lea.vmem %s4, %s593
      $region56: #{vector_quantize.1} parent=51 // pred_fallthru
        _
      // Predicated region
      $region57: #{vector_quantize.1} parent=51 // pred_check
        %p595 = pneg %p175
      $region58: #{vector_quantize.1} parent=51 // pred_check_branch
        %597 = sbr.rel (%p595) target = $region60
      $region59: #{vector_quantize.1} parent=51 // pred_region
        %s598 = smul.u32 2, %s25
        %p599 = scmp.lt.s32.totalorder %s24, 1
        %s600 = scalar_select %p599, %s24, 1
        %p601 = scmp.lt.s32.totalorder %s598, 1
        %s602 = scalar_select %p601, %s598, 1
        %s603 = smul.addr %s600, 2
        %s604 = sadd.s32 %s602, %s603
        %s605 = scalar_lea.vmem %s5, %s604
      $region60: #{vector_quantize.1} parent=51 // pred_fallthru
        _
      // Predicated region
      $region61: #{vector_quantize.1} parent=51 // pred_check
        %p606 = pneg %p203
      $region62: #{vector_quantize.1} parent=51 // pred_check_branch
        %608 = sbr.rel (%p606) target = $region64
      $region63: #{vector_quantize.1} parent=51 // pred_region
        %s609 = smul.u32 2, %s25
        %p610 = scmp.lt.s32.totalorder %s24, 1
        %s611 = scalar_select %p610, %s24, 1
        %p612 = scmp.lt.s32.totalorder %s609, 1
        %s613 = scalar_select %p612, %s609, 1
        %s614 = smul.addr %s611, 2
        %s615 = sadd.s32 %s613, %s614
        %s616 = scalar_lea.vmem %s6, %s615
      $region64: #{vector_quantize.1} parent=51 // pred_fallthru
        _
    $region52: #{vector_quantize.1} parent=5 // pred_fallthru
      _
  $region6: #{vector_quantize.1} parent=0 // loop_footer
    %s17 = sadd.s32 1, %s13
  $region7: #{vector_quantize.1} parent=0 // loop_footer_branch
    %12 = sbr.rel target = $region3
  $region8: #{vector_quantize.1} parent=0 // loop_exit
    _

</llo_original>
